<compile_context>
chip_gen: v7x
topology: tpu7x:2x2x1
jax: 0.10.0
libtpu: 0.0.40
codegen_flags: <defaults>
</compile_context>

<pallas_src>
import math

import jax
import jax.numpy as jnp
from jax.experimental import pallas as pl
from jax.experimental.pallas import tpu as pltpu


# ----------------------------------------------------------------------------
# Generation-aware configuration
# ----------------------------------------------------------------------------
def _tpu_generation_config():
    """Returns (mxu_width, vmem_limit_bytes) for the attached TPU generation."""
    kind = ""
    try:
        kind = jax.devices()[0].device_kind.lower()
    except Exception:
        pass
    # v2-v5e have 128-wide MXUs; v6e / v7x have 256-wide MXUs.
    small_mxu = any(t in kind for t in ("v2", "v3", "v4", "v5 lite", "v5e", "v5lite"))
    mxu = 128 if small_mxu else 256
    # v7x has 64 MiB VMEM per TensorCore; earlier generations have 128 MiB.
    if "7x" in kind or "v7" in kind:
        vmem_limit = 48 * 1024 * 1024
    else:
        vmem_limit = 64 * 1024 * 1024
    return mxu, vmem_limit


def _pick_tile(n, target, align):
    """Largest multiple of `align` that divides n and is <= target, else n."""
    if n <= target:
        return n
    t = (target // align) * align
    while t >= align:
        if n % t == 0:
            return t
        t -= align
    return n  # fall back to the full dimension (see TODO above)


# ----------------------------------------------------------------------------
# Stage 1: fused QKV projection, emitted head-major (and K pre-transposed)
# ----------------------------------------------------------------------------
def _make_qkv_kernel(n_heads, head_dim, d_model, store_dtype, compute_dtype):
    H, hd, D = n_heads, head_dim, d_model

    def kernel(x_ref, wqkv_ref, q_ref, kt_ref, v_ref):
        # x_ref   : (tm, D)       wqkv_ref: (D, 3D)  (scale folded into Q cols)
        # q_ref   : (H, tm, hd)   head-major Q
        # kt_ref  : (H, hd, tm)   head-major K^T (lane-dense stores)
        # v_ref   : (H, tm, hd)   head-major V
        x = x_ref[...].astype(compute_dtype)
        qkv = jnp.dot(x, wqkv_ref[...],
                      preferred_element_type=jnp.float32)        # (tm, 3D) f32
        # One in-kernel transpose of the K columns so stage 2 receives K as
        # (H, hd, S) and its QK^T matmul needs no implicit per-tile transpose.
        k_t = qkv[:, D:2 * D].T                                  # (D, tm)
        for h in range(H):
            q_ref[h] = qkv[:, h * hd:(h + 1) * hd].astype(store_dtype)
            kt_ref[h] = k_t[h * hd:(h + 1) * hd, :].astype(store_dtype)
            v_ref[h] = qkv[:, 2 * D + h * hd:2 * D + (h + 1) * hd].astype(store_dtype)

    return kernel


# ----------------------------------------------------------------------------
# Stage 2: flash attention (heads batched) + fused output projection
# ----------------------------------------------------------------------------
def _make_attn_kernel(n_heads, out_dtype):
    H = n_heads

    def kernel(q_ref, kt_ref, v_ref, wo3_ref, bo_ref, o_ref,
               m_scr, l_scr, acc_scr):
        # q_ref  : (H, tq,  hd)   (scale already folded into q)
        # kt_ref : (H, hd, tkv)   pre-transposed K (lane-dense)
        # v_ref  : (H, tkv, hd)
        # wo3_ref: (H, hd, D)     per-head slices of the output projection
        # bo_ref : (1, D)
        # o_ref  : (tq, D)
        ki = pl.program_id(2)

        @pl.when(ki == 0)
        def _init():
            m_scr[...] = jnp.full_like(m_scr, -jnp.inf)
            l_scr[...] = jnp.zeros_like(l_scr)
            acc_scr[...] = jnp.zeros_like(acc_scr)

        q = q_ref[...]
        kt = kt_ref[...]
        v = v_ref[...]

        # heads-batched QK^T in natural MXU form (no implicit K transpose)
        s = jnp.einsum("hqd,hdk->hqk", q, kt,
                       preferred_element_type=jnp.float32)       # (H, tq, tkv)

        # online (streaming) softmax update
        m_prev = m_scr[...]
        m_new = jnp.maximum(m_prev, s.max(axis=-1, keepdims=True))
        alpha = jnp.exp(m_prev - m_new)
        p = jnp.exp(s - m_new)
        l_scr[...] = alpha * l_scr[...] + p.sum(axis=-1, keepdims=True)
        acc_scr[...] = alpha * acc_scr[...] + jnp.einsum(
            "hqk,hkd->hqd", p.astype(v.dtype), v,
            preferred_element_type=jnp.float32)
        m_scr[...] = m_new

        @pl.when(ki == pl.num_programs(2) - 1)
        def _finalize():
            # exact reciprocal: runs once per q-tile, off the hot kv loop
            inv_l = pl.reciprocal(l_scr[...], approx=False)
            attn = acc_scr[...] * inv_l                          # (H, tq, hd) f32
            # Output projection accumulated per head directly into (tq, D):
            # no (H, tq, D) intermediate (would fill the vreg file and spill).
            out = jnp.dot(attn[0], wo3_ref[0],
                          preferred_element_type=jnp.float32)
            for h in range(1, H):
                out = out + jnp.dot(attn[h], wo3_ref[h],
                                    preferred_element_type=jnp.float32)
            o_ref[...] = (out + bo_ref[...]).astype(out_dtype)

    return kernel


# ----------------------------------------------------------------------------
# Wrapper
# ----------------------------------------------------------------------------
def self_attention(x, wq, wk, wv, wo, bo, *, n_heads, compute_dtype=None,
                   block_q=256, block_kv=None, block_rows=512):
    """x: (B, S, D); wq/wk/wv/wo: (D, D) in (in, out) layout; bo: (D,)."""
    B, S, D = x.shape
    H = n_heads
    hd = D // H
    assert H * hd == D, "d_model must be divisible by n_heads"
    scale = 1.0 / math.sqrt(hd)
    out_dtype = x.dtype
    compute_dtype = out_dtype if compute_dtype is None else jnp.dtype(compute_dtype)

    mxu, vmem_limit = _tpu_generation_config()
    if block_kv is None:
        block_kv = 256 if mxu >= 256 else 128   # fill the MXU width on v6e/v7x

    # ---- host-side weight packing (pure layout plumbing) --------------------
    wqkv = jnp.concatenate([wq * scale, wk, wv], axis=1).astype(compute_dtype)
    wo3 = wo.reshape(H, hd, D).astype(jnp.float32)     # per-head output proj
    bo2 = bo.reshape(1, D).astype(jnp.float32)

    # ---- stage 1: fused QKV projection emitted head-major --------------------
    tm = _pick_tile(S, block_rows, 128)                # tm is a lane dim of K^T
    n_m = S // tm
    qkv_kernel = _make_qkv_kernel(H, hd, D, compute_dtype, compute_dtype)
    q_hm, k_t, v_hm = pl.pallas_call(
        qkv_kernel,
        out_shape=(
            jax.ShapeDtypeStruct((B, H, S, hd), compute_dtype),   # Q head-major
            jax.ShapeDtypeStruct((B, H, hd, S), compute_dtype),   # K^T head-major
            jax.ShapeDtypeStruct((B, H, S, hd), compute_dtype),   # V head-major
        ),
        grid_spec=pltpu.PrefetchScalarGridSpec(
            num_scalar_prefetch=0,
            grid=(B, n_m),
            in_specs=[
                pl.BlockSpec((pl.Squeezed(), tm, D), lambda b, i: (b, i, 0)),
                pl.BlockSpec((D, 3 * D), lambda b, i: (0, 0)),
            ],
            out_specs=(
                pl.BlockSpec((pl.Squeezed(), H, tm, hd), lambda b, i: (b, 0, i, 0)),
                pl.BlockSpec((pl.Squeezed(), H, hd, tm), lambda b, i: (b, 0, 0, i)),
                pl.BlockSpec((pl.Squeezed(), H, tm, hd), lambda b, i: (b, 0, i, 0)),
            ),
        ),
        compiler_params=pltpu.CompilerParams(
            dimension_semantics=("parallel", "parallel"),
            vmem_limit_bytes=vmem_limit),
    )(x, wqkv)

    # ---- stage 2: flash attention + fused output projection ------------------
    tq = _pick_tile(S, block_q, 128)
    if tq == S and S > block_q:
        tq = _pick_tile(S, block_q, 8)                 # tq is sublane-only
    tkv = _pick_tile(S, block_kv, 128)                 # tkv is a lane dim of K^T
    # Guarantee >= 2 parallel grid steps for v7x's dual TensorCores / megacore.
    if B == 1 and S // tq == 1 and tq >= 256 and tq % 256 == 0:
        tq //= 2
    n_q = S // tq
    n_kv = S // tkv

    attn_kernel = _make_attn_kernel(H, out_dtype)
    out = pl.pallas_call(
        attn_kernel,
        out_shape=jax.ShapeDtypeStruct((B, S, D), out_dtype),
        grid_spec=pltpu.PrefetchScalarGridSpec(
            num_scalar_prefetch=0,
            grid=(B, n_q, n_kv),
            in_specs=[
                pl.BlockSpec((pl.Squeezed(), H, tq, hd),
                             lambda b, qi, ki: (b, 0, qi, 0)),    # Q
                pl.BlockSpec((pl.Squeezed(), H, hd, tkv),
                             lambda b, qi, ki: (b, 0, 0, ki)),    # K^T
                pl.BlockSpec((pl.Squeezed(), H, tkv, hd),
                             lambda b, qi, ki: (b, 0, ki, 0)),    # V
                pl.BlockSpec((H, hd, D), lambda b, qi, ki: (0, 0, 0)),  # Wo
                pl.BlockSpec((1, D), lambda b, qi, ki: (0, 0)),         # bias
            ],
            out_specs=pl.BlockSpec((pl.Squeezed(), tq, D),
                                   lambda b, qi, ki: (b, qi, 0)),
            scratch_shapes=[
                pltpu.VMEM((H, tq, 1), jnp.float32),    # running max
                pltpu.VMEM((H, tq, 1), jnp.float32),    # running denom
                pltpu.VMEM((H, tq, hd), jnp.float32),   # running numerator
            ],
        ),
        compiler_params=pltpu.CompilerParams(
            dimension_semantics=("parallel", "parallel", "arbitrary"),
            vmem_limit_bytes=vmem_limit),
    )(q_hm, k_t, v_hm, wo3, bo2)

    return out


# ----------------------------------------------------------------------------
# Pure-JAX reference (mirrors the PyTorch forward)
# ----------------------------------------------------------------------------
def self_attention_ref(x, wq, wk, wv, wo, bo, *, n_heads):
    B, S, D = x.shape
    hd = D // n_heads
    q = (x @ wq).reshape(B, S, n_heads, hd).transpose(0, 2, 1, 3)
    k = (x @ wk).reshape(B, S, n_heads, hd).transpose(0, 2, 1, 3)
    v = (x @ wv).reshape(B, S, n_heads, hd).transpose(0, 2, 1, 3)
    scores = jnp.einsum("bhqd,bhkd->bhqk", q, k) / math.sqrt(hd)
    attn = jax.nn.softmax(scores, axis=-1)
    out = jnp.einsum("bhqk,bhkd->bhqd", attn, v)
    out = out.transpose(0, 2, 1, 3).reshape(B, S, D)
    return out @ wo + bo


# ----------------------------------------------------------------------------
def _make_inputs(key, B, S, D):
    kx, kq, kk, kv, ko, kb = jax.random.split(key, 6)
    scale = 1.0 / math.sqrt(D)
    x = jax.random.normal(kx, (B, S, D), dtype=jnp.float32)
    wq = jax.random.uniform(kq, (D, D), jnp.float32, -scale, scale)
    wk = jax.random.uniform(kk, (D, D), jnp.float32, -scale, scale)
    wv = jax.random.uniform(kv, (D, D), jnp.float32, -scale, scale)
    wo = jax.random.uniform(ko, (D, D), jnp.float32, -scale, scale)
    bo = jax.random.uniform(kb, (D,), jnp.float32, -scale, scale)
    return x, wq, wk, wv, wo, bo


if __name__ == "__main__":
    key = jax.random.PRNGKey(0)
    k1, k2 = jax.random.split(key)

    # case: (key, B, S, D, H, compute_dtype, atol/rtol)
    cases = [
        (k1, 2, 8, 32, 4, None, 2e-3),          # tiny module-spec shapes
        (k2, 1, 512, 128, 4, None, 2e-3),       # multi q-tile / multi kv-tile
        (k2, 1, 512, 128, 4, jnp.bfloat16, 3e-2),  # bf16 operands, f32 accum
    ]
    for kcase, B, S, D, H, cdt, tol in cases:
        x, wq, wk, wv, wo, bo = _make_inputs(kcase, B, S, D)
        out = self_attention(x, wq, wk, wv, wo, bo, n_heads=H, compute_dtype=cdt)
        out = jax.block_until_ready(out)
        ref = self_attention_ref(x, wq, wk, wv, wo, bo, n_heads=H)
        assert out.shape == (B, S, D)
        assert jnp.allclose(out, ref, atol=tol, rtol=tol), (
            f"mismatch vs reference (B={B}, S={S}, D={D}, H={H}, dtype={cdt}), "
            f"max|err|={float(jnp.max(jnp.abs(out - ref)))}")

    print("KERNEL_OK")
</pallas_src>

<mosaic_0001>
module attributes {stable_mosaic.version = 11 : i64} {
  func.func @kernel(%arg0: i32, %arg1: i32, %arg2: memref<1x8x32xf32, #tpu.memory_space<vmem>>, %arg3: memref<32x96xf32, #tpu.memory_space<vmem>>, %arg4: memref<1x4x8x8xf32, #tpu.memory_space<vmem>>, %arg5: memref<1x4x8x8xf32, #tpu.memory_space<vmem>>, %arg6: memref<1x4x8x8xf32, #tpu.memory_space<vmem>>) attributes {dimension_semantics = [#tpu.dimension_semantics<parallel>, #tpu.dimension_semantics<parallel>], iteration_bounds = array<i64: 2, 1>, scalar_prefetch = 0 : i64, scratch_operands = 0 : i64, tpu.core_type = #tpu.core_type<tc>, window_params = [{transform_indices = @transform_0, window_bounds = array<i64: 1, 8, 32>}, {pipeline_mode = #tpu.pipeline_mode<synchronous>, transform_indices = @transform_1, window_bounds = array<i64: 32, 96>}, {transform_indices = @transform_2, window_bounds = array<i64: 1, 4, 8, 8>}, {transform_indices = @transform_3, window_bounds = array<i64: 1, 4, 8, 8>}, {transform_indices = @transform_4, window_bounds = array<i64: 1, 4, 8, 8>}]} {
    %c0 = arith.constant 0 : index
    %c0_0 = arith.constant 0 : index
    %c0_1 = arith.constant 0 : index
    %0 = vector.load %arg2[%c0, %c0_0, %c0_1] : memref<1x8x32xf32, #tpu.memory_space<vmem>>, vector<1x8x32xf32>
    %1 = vector.shape_cast %0 : vector<1x8x32xf32> to vector<8x32xf32>
    %c0_2 = arith.constant 0 : index
    %c0_3 = arith.constant 0 : index
    %2 = vector.load %arg3[%c0_2, %c0_3] : memref<32x96xf32, #tpu.memory_space<vmem>>, vector<32x96xf32>
    %cst = arith.constant dense<0.000000e+00> : vector<8x96xf32>
    %3 = tpu.matmul %1, %2, %cst {dimension_numbers = #tpu.dot_dimension_numbers<[1], [0], [0], [1], [0, 0, 1, 1], [], []>} : vector<8x32xf32>, vector<32x96xf32>, vector<8x96xf32> -> vector<8x96xf32>
    %4 = vector.extract_strided_slice %3 {offsets = [0, 32], sizes = [8, 32], strides = [1, 1]} : vector<8x96xf32> to vector<8x32xf32>
    %5 = tpu.transpose %4, [1, 0] : vector<8x32xf32> -> vector<32x8xf32>
    %6 = vector.extract_strided_slice %3 {offsets = [0, 0], sizes = [8, 8], strides = [1, 1]} : vector<8x96xf32> to vector<8x8xf32>
    %c0_4 = arith.constant 0 : index
    %c0_5 = arith.constant 0 : index
    %c0_6 = arith.constant 0 : index
    %c0_7 = arith.constant 0 : index
    %7 = vector.load %arg4[%c0_4, %c0_5, %c0_6, %c0_7] : memref<1x4x8x8xf32, #tpu.memory_space<vmem>>, vector<1x1x8x8xf32>
    %8 = vector.shape_cast %7 : vector<1x1x8x8xf32> to vector<8x8xf32>
    %9 = vector.shape_cast %6 : vector<8x8xf32> to vector<1x1x8x8xf32>
    tpu.vector_store %arg4[%c0_4, %c0_5, %c0_6, %c0_7], %9 {strides = array<i32>} : memref<1x4x8x8xf32, #tpu.memory_space<vmem>>, vector<1x1x8x8xf32>,
    %10 = vector.extract_strided_slice %5 {offsets = [0, 0], sizes = [8, 8], strides = [1, 1]} : vector<32x8xf32> to vector<8x8xf32>
    %c0_8 = arith.constant 0 : index
    %c0_9 = arith.constant 0 : index
    %c0_10 = arith.constant 0 : index
    %c0_11 = arith.constant 0 : index
    %11 = vector.load %arg5[%c0_8, %c0_9, %c0_10, %c0_11] : memref<1x4x8x8xf32, #tpu.memory_space<vmem>>, vector<1x1x8x8xf32>
    %12 = vector.shape_cast %11 : vector<1x1x8x8xf32> to vector<8x8xf32>
    %13 = vector.shape_cast %10 : vector<8x8xf32> to vector<1x1x8x8xf32>
    tpu.vector_store %arg5[%c0_8, %c0_9, %c0_10, %c0_11], %13 {strides = array<i32>} : memref<1x4x8x8xf32, #tpu.memory_space<vmem>>, vector<1x1x8x8xf32>,
    %14 = vector.extract_strided_slice %3 {offsets = [0, 64], sizes = [8, 8], strides = [1, 1]} : vector<8x96xf32> to vector<8x8xf32>
    %c0_12 = arith.constant 0 : index
    %c0_13 = arith.constant 0 : index
    %c0_14 = arith.constant 0 : index
    %c0_15 = arith.constant 0 : index
    %15 = vector.load %arg6[%c0_12, %c0_13, %c0_14, %c0_15] : memref<1x4x8x8xf32, #tpu.memory_space<vmem>>, vector<1x1x8x8xf32>
    %16 = vector.shape_cast %15 : vector<1x1x8x8xf32> to vector<8x8xf32>
    %17 = vector.shape_cast %14 : vector<8x8xf32> to vector<1x1x8x8xf32>
    tpu.vector_store %arg6[%c0_12, %c0_13, %c0_14, %c0_15], %17 {strides = array<i32>} : memref<1x4x8x8xf32, #tpu.memory_space<vmem>>, vector<1x1x8x8xf32>,
    %18 = vector.extract_strided_slice %3 {offsets = [0, 8], sizes = [8, 8], strides = [1, 1]} : vector<8x96xf32> to vector<8x8xf32>
    %c0_16 = arith.constant 0 : index
    %c1 = arith.constant 1 : index
    %c0_17 = arith.constant 0 : index
    %c0_18 = arith.constant 0 : index
    %19 = vector.load %arg4[%c0_16, %c1, %c0_17, %c0_18] : memref<1x4x8x8xf32, #tpu.memory_space<vmem>>, vector<1x1x8x8xf32>
    %20 = vector.shape_cast %19 : vector<1x1x8x8xf32> to vector<8x8xf32>
    %21 = vector.shape_cast %18 : vector<8x8xf32> to vector<1x1x8x8xf32>
    tpu.vector_store %arg4[%c0_16, %c1, %c0_17, %c0_18], %21 {strides = array<i32>} : memref<1x4x8x8xf32, #tpu.memory_space<vmem>>, vector<1x1x8x8xf32>,
    %22 = vector.extract_strided_slice %5 {offsets = [8, 0], sizes = [8, 8], strides = [1, 1]} : vector<32x8xf32> to vector<8x8xf32>
    %c0_19 = arith.constant 0 : index
    %c1_20 = arith.constant 1 : index
    %c0_21 = arith.constant 0 : index
    %c0_22 = arith.constant 0 : index
    %23 = vector.load %arg5[%c0_19, %c1_20, %c0_21, %c0_22] : memref<1x4x8x8xf32, #tpu.memory_space<vmem>>, vector<1x1x8x8xf32>
    %24 = vector.shape_cast %23 : vector<1x1x8x8xf32> to vector<8x8xf32>
    %25 = vector.shape_cast %22 : vector<8x8xf32> to vector<1x1x8x8xf32>
    tpu.vector_store %arg5[%c0_19, %c1_20, %c0_21, %c0_22], %25 {strides = array<i32>} : memref<1x4x8x8xf32, #tpu.memory_space<vmem>>, vector<1x1x8x8xf32>,
    %26 = vector.extract_strided_slice %3 {offsets = [0, 72], sizes = [8, 8], strides = [1, 1]} : vector<8x96xf32> to vector<8x8xf32>
    %c0_23 = arith.constant 0 : index
    %c1_24 = arith.constant 1 : index
    %c0_25 = arith.constant 0 : index
    %c0_26 = arith.constant 0 : index
    %27 = vector.load %arg6[%c0_23, %c1_24, %c0_25, %c0_26] : memref<1x4x8x8xf32, #tpu.memory_space<vmem>>, vector<1x1x8x8xf32>
    %28 = vector.shape_cast %27 : vector<1x1x8x8xf32> to vector<8x8xf32>
    %29 = vector.shape_cast %26 : vector<8x8xf32> to vector<1x1x8x8xf32>
    tpu.vector_store %arg6[%c0_23, %c1_24, %c0_25, %c0_26], %29 {strides = array<i32>} : memref<1x4x8x8xf32, #tpu.memory_space<vmem>>, vector<1x1x8x8xf32>,
    %30 = vector.extract_strided_slice %3 {offsets = [0, 16], sizes = [8, 8], strides = [1, 1]} : vector<8x96xf32> to vector<8x8xf32>
    %c0_27 = arith.constant 0 : index
    %c2 = arith.constant 2 : index
    %c0_28 = arith.constant 0 : index
    %c0_29 = arith.constant 0 : index
    %31 = vector.load %arg4[%c0_27, %c2, %c0_28, %c0_29] : memref<1x4x8x8xf32, #tpu.memory_space<vmem>>, vector<1x1x8x8xf32>
    %32 = vector.shape_cast %31 : vector<1x1x8x8xf32> to vector<8x8xf32>
    %33 = vector.shape_cast %30 : vector<8x8xf32> to vector<1x1x8x8xf32>
    tpu.vector_store %arg4[%c0_27, %c2, %c0_28, %c0_29], %33 {strides = array<i32>} : memref<1x4x8x8xf32, #tpu.memory_space<vmem>>, vector<1x1x8x8xf32>,
    %34 = vector.extract_strided_slice %5 {offsets = [16, 0], sizes = [8, 8], strides = [1, 1]} : vector<32x8xf32> to vector<8x8xf32>
    %c0_30 = arith.constant 0 : index
    %c2_31 = arith.constant 2 : index
    %c0_32 = arith.constant 0 : index
    %c0_33 = arith.constant 0 : index
    %35 = vector.load %arg5[%c0_30, %c2_31, %c0_32, %c0_33] : memref<1x4x8x8xf32, #tpu.memory_space<vmem>>, vector<1x1x8x8xf32>
    %36 = vector.shape_cast %35 : vector<1x1x8x8xf32> to vector<8x8xf32>
    %37 = vector.shape_cast %34 : vector<8x8xf32> to vector<1x1x8x8xf32>
    tpu.vector_store %arg5[%c0_30, %c2_31, %c0_32, %c0_33], %37 {strides = array<i32>} : memref<1x4x8x8xf32, #tpu.memory_space<vmem>>, vector<1x1x8x8xf32>,
    %38 = vector.extract_strided_slice %3 {offsets = [0, 80], sizes = [8, 8], strides = [1, 1]} : vector<8x96xf32> to vector<8x8xf32>
    %c0_34 = arith.constant 0 : index
    %c2_35 = arith.constant 2 : index
    %c0_36 = arith.constant 0 : index
    %c0_37 = arith.constant 0 : index
    %39 = vector.load %arg6[%c0_34, %c2_35, %c0_36, %c0_37] : memref<1x4x8x8xf32, #tpu.memory_space<vmem>>, vector<1x1x8x8xf32>
    %40 = vector.shape_cast %39 : vector<1x1x8x8xf32> to vector<8x8xf32>
    %41 = vector.shape_cast %38 : vector<8x8xf32> to vector<1x1x8x8xf32>
    tpu.vector_store %arg6[%c0_34, %c2_35, %c0_36, %c0_37], %41 {strides = array<i32>} : memref<1x4x8x8xf32, #tpu.memory_space<vmem>>, vector<1x1x8x8xf32>,
    %42 = vector.extract_strided_slice %3 {offsets = [0, 24], sizes = [8, 8], strides = [1, 1]} : vector<8x96xf32> to vector<8x8xf32>
    %c0_38 = arith.constant 0 : index
    %c3 = arith.constant 3 : index
    %c0_39 = arith.constant 0 : index
    %c0_40 = arith.constant 0 : index
    %43 = vector.load %arg4[%c0_38, %c3, %c0_39, %c0_40] : memref<1x4x8x8xf32, #tpu.memory_space<vmem>>, vector<1x1x8x8xf32>
    %44 = vector.shape_cast %43 : vector<1x1x8x8xf32> to vector<8x8xf32>
    %45 = vector.shape_cast %42 : vector<8x8xf32> to vector<1x1x8x8xf32>
    tpu.vector_store %arg4[%c0_38, %c3, %c0_39, %c0_40], %45 {strides = array<i32>} : memref<1x4x8x8xf32, #tpu.memory_space<vmem>>, vector<1x1x8x8xf32>,
    %46 = vector.extract_strided_slice %5 {offsets = [24, 0], sizes = [8, 8], strides = [1, 1]} : vector<32x8xf32> to vector<8x8xf32>
    %c0_41 = arith.constant 0 : index
    %c3_42 = arith.constant 3 : index
    %c0_43 = arith.constant 0 : index
    %c0_44 = arith.constant 0 : index
    %47 = vector.load %arg5[%c0_41, %c3_42, %c0_43, %c0_44] : memref<1x4x8x8xf32, #tpu.memory_space<vmem>>, vector<1x1x8x8xf32>
    %48 = vector.shape_cast %47 : vector<1x1x8x8xf32> to vector<8x8xf32>
    %49 = vector.shape_cast %46 : vector<8x8xf32> to vector<1x1x8x8xf32>
    tpu.vector_store %arg5[%c0_41, %c3_42, %c0_43, %c0_44], %49 {strides = array<i32>} : memref<1x4x8x8xf32, #tpu.memory_space<vmem>>, vector<1x1x8x8xf32>,
    %50 = vector.extract_strided_slice %3 {offsets = [0, 88], sizes = [8, 8], strides = [1, 1]} : vector<8x96xf32> to vector<8x8xf32>
    %c0_45 = arith.constant 0 : index
    %c3_46 = arith.constant 3 : index
    %c0_47 = arith.constant 0 : index
    %c0_48 = arith.constant 0 : index
    %51 = vector.load %arg6[%c0_45, %c3_46, %c0_47, %c0_48] : memref<1x4x8x8xf32, #tpu.memory_space<vmem>>, vector<1x1x8x8xf32>
    %52 = vector.shape_cast %51 : vector<1x1x8x8xf32> to vector<8x8xf32>
    %53 = vector.shape_cast %50 : vector<8x8xf32> to vector<1x1x8x8xf32>
    tpu.vector_store %arg6[%c0_45, %c3_46, %c0_47, %c0_48], %53 {strides = array<i32>} : memref<1x4x8x8xf32, #tpu.memory_space<vmem>>, vector<1x1x8x8xf32>,
    return
  }
  func.func @transform_0(%arg0: i32, %arg1: i32) -> (i32, i32, i32) {
    %c0_i32 = arith.constant 0 : i32
    %c0_i32_0 = arith.constant 0 : i32
    return %arg0, %arg1, %c0_i32 : i32, i32, i32
  }
  func.func @transform_1(%arg0: i32, %arg1: i32) -> (i32, i32) {
    %c0_i32 = arith.constant 0 : i32
    %c0_i32_0 = arith.constant 0 : i32
    %c0_i32_1 = arith.constant 0 : i32
    return %c0_i32, %c0_i32_0 : i32, i32
  }
  func.func @transform_2(%arg0: i32, %arg1: i32) -> (i32, i32, i32, i32) {
    %c0_i32 = arith.constant 0 : i32
    %c0_i32_0 = arith.constant 0 : i32
    %c0_i32_1 = arith.constant 0 : i32
    return %arg0, %c0_i32, %arg1, %c0_i32_0 : i32, i32, i32, i32
  }
  func.func @transform_3(%arg0: i32, %arg1: i32) -> (i32, i32, i32, i32) {
    %c0_i32 = arith.constant 0 : i32
    %c0_i32_0 = arith.constant 0 : i32
    %c0_i32_1 = arith.constant 0 : i32
    return %arg0, %c0_i32, %c0_i32_0, %arg1 : i32, i32, i32, i32
  }
  func.func @transform_4(%arg0: i32, %arg1: i32) -> (i32, i32, i32, i32) {
    %c0_i32 = arith.constant 0 : i32
    %c0_i32_0 = arith.constant 0 : i32
    %c0_i32_1 = arith.constant 0 : i32
    return %arg0, %c0_i32, %arg1, %c0_i32_0 : i32, i32, i32, i32
  }
}

</mosaic_0001>

<llo_original>
// kernel: tpu_custom_call.1
$region0: #{tpu_custom_call.1}
  #allocation0 [shape = 'u32[]', space=smem, size = 0x4, offset = 0x4, fixed_abs, tag = 'smem constant byte address 0x4 - core index']
  #allocation1 [shape = 'u32[144,128]{1,0:T(1,128)}', space=vmem, size = 0x12000, scoped, tag = 'internal scratch']
  %s0 = inlined_call_operand.hbm [shape: f32[2,8,32], index: 0, kind: input, shape index: {}]
  %s1 = inlined_call_operand.hbm [shape: f32[32,96], index: 1, kind: input, shape index: {}]
  %s2 = inlined_call_operand.hbm [shape: f32[2,4,8,8], index: 2, kind: output, shape index: {0}]
  %s3 = inlined_call_operand.hbm [shape: f32[2,4,8,8], index: 3, kind: output, shape index: {1}]
  %s4 = inlined_call_operand.hbm [shape: f32[2,4,8,8], index: 4, kind: output, shape index: {2}]
  %5 = xla_tuple %s2, %s3, %s4
  %s6 = sld [smem:[#allocation0]]
  $region65: #{tpu_custom_call.1} parent=0
    _
  %s8 = ssub.s32 1, %s6
  %s9 = scalar_select 0, %s8, %s6
  $region1: #{tpu_custom_call.1} parent=0
    #allocation2 [shape = 'u8[8192]{0}', space=vmem, size = 0x2000, scoped, tag = 'input window, operand 0']
    #allocation3 [shape = 's32[2]{0}', space=sflag, size = 0x8, scoped, tag = 'scoped memory for tpu_custom_call.1']
    #allocation4 [shape = 's32[2]{0}', space=sflag, size = 0x8, scoped, tag = 'scoped memory for tpu_custom_call.1']
    #allocation5 [shape = 'u8[16384]{0}', space=vmem, size = 0x4000, scoped, tag = 'input window, operand 1, single buffered']
    #allocation6 [shape = 's32[1]{0}', space=sflag, size = 0x4, scoped, tag = 'scoped memory for tpu_custom_call.1']
    #allocation7 [shape = 'u8[32768]{0}', space=vmem, size = 0x8000, scoped, tag = 'output window, operand 0']
    #allocation8 [shape = 'u8[32768]{0}', space=vmem, size = 0x8000, scoped, tag = 'output window, operand 1']
    #allocation9 [shape = 's32[2]{0}', space=sflag, size = 0x8, scoped, tag = 'scoped memory for tpu_custom_call.1']
    #allocation10 [shape = 'u8[32768]{0}', space=vmem, size = 0x8000, scoped, tag = 'output window, operand 2']
    %10 = vsyncpa [#allocation3], 0
    %s11 = scalar_lea.sflag [#allocation3], 1
    %12 = vsyncpa %s11, 0
    %13 = vsyncpa [#allocation6], 0
    %14 = vsyncpa [#allocation4], 0
    %s15 = scalar_lea.sflag [#allocation4], 1
    %16 = vsyncpa %s15, 0
    %17 = vsyncpa [#allocation9], 0
    %s18 = scalar_lea.sflag [#allocation9], 1
    %19 = vsyncpa %s18, 0
    loop: start=0, step=1, limit=4
    $region2: #{tpu_custom_call.1} parent=1 // loop_pre_header
      _
    $region3: #{tpu_custom_call.1} parent=1 // loop_header
      %s21 = sphi 0, %s25
      %p22 = scmp.ge.s32.totalorder %s21, 4
      %s28 = sphi 0, %s40
      %s29 = sphi 0, %s36
      %s30 = sphi 0, %s28
      %s31 = sphi 0, %s29
      %s32 = sphi 0, %s30
      %s33 = sphi 0, %s31
      %s45 = sphi 0, %s47
      %s48 = sphi 0, %s45
      %s49 = sphi 0, %s48
      %s65 = sphi 0, %s49
      %s69 = sphi 0, %s69
      %s71 = sphi 0, %s69
      %s72 = sphi 0, %s71
      %s86 = sphi 0, %s72
      %s94 = sphi 0, %s96
      %s97 = sphi 0, %s94
      %s98 = sphi 0, %s97
      %s114 = sphi 0, %s98
      %s122 = sphi 0, %s124
      %s125 = sphi 0, %s122
      %s126 = sphi 0, %s125
      %s142 = sphi 0, %s126
      %s150 = sphi 0, %s152
      %s153 = sphi 0, %s150
      %s154 = sphi 0, %s153
      %s170 = sphi 0, %s154
    $region4: #{tpu_custom_call.1} parent=1 // loop_header_branch
      %24 = sbr.rel (%p22) target = $region8
    $region5: #{tpu_custom_call.1} parent=1 // loop_body
      %s26 = ssub.s32 %s21, 1
      %s27 = ssub.s32 %s21, 2
      %s34 = sadd.s32 1, %s29
      %p35 = scmp.ge.s32.totalorder %s34, 1
      %s36 = scalar_select %p35, 0, %s34
      %s37 = sadd.s32 1, %s28
      %s38 = scalar_select %p35, %s37, %s28
      %p39 = scmp.ge.s32.totalorder %s38, 2
      %s40 = scalar_select %p39, 0, %s38
      %s41 = ssub.s32 %s28, %s40
      %s42 = ssub.s32 %s29, %s36
      %s43 = sor.u32 %s41, %s42
      %p44 = scmp.eq.s32.totalorder %s43, 0
      %s46 = sadd.s32 %s45, 1
      %s47 = scalar_select %p44, %s45, %s46
      %p50 = pneg %p44
      %p51 = scmp.eq.s32.totalorder %s21, 1
      %p52 = por %p50, %p51
      %p53 = scmp.ne.s32.totalorder %s45, %s48
      %p54 = scmp.eq.s32.totalorder %s21, 0
      %p55 = por %p53, %p54
      %p56 = scmp.ne.s32.totalorder %s45, %s48
      %p57 = scmp.eq.s32.totalorder %s26, 1
      %p58 = por %p56, %p57
      %p59 = scmp.ne.s32.totalorder %s48, %s49
      %p60 = scmp.eq.s32.totalorder %s26, 0
      %p61 = por %p59, %p60
      %p62 = scmp.ne.s32.totalorder %s48, %s49
      %p63 = scmp.eq.s32.totalorder %s27, 1
      %p64 = por %p62, %p63
      %p66 = scmp.ne.s32.totalorder %s49, %s65
      %p67 = scmp.eq.s32.totalorder %s27, 0
      %p68 = por %p66, %p67
      %s70 = sadd.s32 %s69, 1
      %p73 = scmp.eq.s32.totalorder %s21, 1
      %p74 = scmp.ne.s32.totalorder %s69, %s71
      %p75 = scmp.eq.s32.totalorder %s21, 0
      %p76 = por %p74, %p75
      %p77 = scmp.ne.s32.totalorder %s69, %s71
      %p78 = scmp.eq.s32.totalorder %s26, 1
      %p79 = por %p77, %p78
      %p80 = scmp.ne.s32.totalorder %s71, %s72
      %p81 = scmp.eq.s32.totalorder %s26, 0
      %p82 = por %p80, %p81
      %p83 = scmp.ne.s32.totalorder %s71, %s72
      %p84 = scmp.eq.s32.totalorder %s27, 1
      %p85 = por %p83, %p84
      %p87 = scmp.ne.s32.totalorder %s72, %s86
      %p88 = scmp.eq.s32.totalorder %s27, 0
      %p89 = por %p87, %p88
      %s90 = ssub.s32 %s28, %s40
      %s91 = ssub.s32 %s29, %s36
      %s92 = sor.u32 %s90, %s91
      %p93 = scmp.eq.s32.totalorder %s92, 0
      %s95 = sadd.s32 %s94, 1
      %s96 = scalar_select %p93, %s94, %s95
      %p99 = pneg %p93
      %p100 = scmp.eq.s32.totalorder %s21, 1
      %p101 = por %p99, %p100
      %p102 = scmp.ne.s32.totalorder %s94, %s97
      %p103 = scmp.eq.s32.totalorder %s21, 0
      %p104 = por %p102, %p103
      %p105 = scmp.ne.s32.totalorder %s94, %s97
      %p106 = scmp.eq.s32.totalorder %s26, 1
      %p107 = por %p105, %p106
      %p108 = scmp.ne.s32.totalorder %s97, %s98
      %p109 = scmp.eq.s32.totalorder %s26, 0
      %p110 = por %p108, %p109
      %p111 = scmp.ne.s32.totalorder %s97, %s98
      %p112 = scmp.eq.s32.totalorder %s27, 1
      %p113 = por %p111, %p112
      %p115 = scmp.ne.s32.totalorder %s98, %s114
      %p116 = scmp.eq.s32.totalorder %s27, 0
      %p117 = por %p115, %p116
      %s118 = ssub.s32 %s28, %s40
      %s119 = ssub.s32 %s29, %s36
      %s120 = sor.u32 %s118, %s119
      %p121 = scmp.eq.s32.totalorder %s120, 0
      %s123 = sadd.s32 %s122, 1
      %s124 = scalar_select %p121, %s122, %s123
      %p127 = pneg %p121
      %p128 = scmp.eq.s32.totalorder %s21, 1
      %p129 = por %p127, %p128
      %p130 = scmp.ne.s32.totalorder %s122, %s125
      %p131 = scmp.eq.s32.totalorder %s21, 0
      %p132 = por %p130, %p131
      %p133 = scmp.ne.s32.totalorder %s122, %s125
      %p134 = scmp.eq.s32.totalorder %s26, 1
      %p135 = por %p133, %p134
      %p136 = scmp.ne.s32.totalorder %s125, %s126
      %p137 = scmp.eq.s32.totalorder %s26, 0
      %p138 = por %p136, %p137
      %p139 = scmp.ne.s32.totalorder %s125, %s126
      %p140 = scmp.eq.s32.totalorder %s27, 1
      %p141 = por %p139, %p140
      %p143 = scmp.ne.s32.totalorder %s126, %s142
      %p144 = scmp.eq.s32.totalorder %s27, 0
      %p145 = por %p143, %p144
      %s146 = ssub.s32 %s28, %s40
      %s147 = ssub.s32 %s29, %s36
      %s148 = sor.u32 %s146, %s147
      %p149 = scmp.eq.s32.totalorder %s148, 0
      %s151 = sadd.s32 %s150, 1
      %s152 = scalar_select %p149, %s150, %s151
      %p155 = pneg %p149
      %p156 = scmp.eq.s32.totalorder %s21, 1
      %p157 = por %p155, %p156
      %p158 = scmp.ne.s32.totalorder %s150, %s153
      %p159 = scmp.eq.s32.totalorder %s21, 0
      %p160 = por %p158, %p159
      %p161 = scmp.ne.s32.totalorder %s150, %s153
      %p162 = scmp.eq.s32.totalorder %s26, 1
      %p163 = por %p161, %p162
      %p164 = scmp.ne.s32.totalorder %s153, %s154
      %p165 = scmp.eq.s32.totalorder %s26, 0
      %p166 = por %p164, %p165
      %p167 = scmp.ne.s32.totalorder %s153, %s154
      %p168 = scmp.eq.s32.totalorder %s27, 1
      %p169 = por %p167, %p168
      %p171 = scmp.ne.s32.totalorder %s154, %s170
      %p172 = scmp.eq.s32.totalorder %s27, 0
      %p173 = por %p171, %p172
      %p174 = scmp.le.s32.totalorder 1, %s21
      %p175 = scmp.lt.s32.totalorder %s21, 3
      %p176 = pnand %p174, %p175
      %p177 = pneg %p176
      // Predicated region
      $region9: #{tpu_custom_call.1} parent=5 // pred_check
        _
      $region10: #{tpu_custom_call.1} parent=5 // pred_check_branch
        %179 = sbr.rel (%p176) target = $region12
      $region11: #{tpu_custom_call.1} parent=5 // pred_region
        %s180 = ssub.s32 %s21, 1
        // Predicated region
        $region13: #{tpu_custom_call.1} parent=11 // pred_check
          %p181 = pneg %p82
        $region14: #{tpu_custom_call.1} parent=11 // pred_check_branch
          %183 = sbr.rel (%p181) target = $region16
        $region15: #{tpu_custom_call.1} parent=11 // pred_region
          %s185 = ssub.s32 512, 512
          %186 = vsyncadd [#allocation6], %s185
          %s187 = sshll.u32 [#allocation5], 4
          %s188 = int_to_ptr.vmem [resolvable:$true] %s187
          %193 = dma.hbm_to_vmem [thread:$0]  %s1, 512, %s188, [#allocation6], 128, 128, 8
        $region16: #{tpu_custom_call.1} parent=11 // pred_fallthru
          _
      $region12: #{tpu_custom_call.1} parent=5 // pred_fallthru
        _
      %p194 = scmp.lt.s32.totalorder %s21, 2
      // Predicated region
      $region17: #{tpu_custom_call.1} parent=5 // pred_check
        %p195 = pneg %p194
      $region18: #{tpu_custom_call.1} parent=5 // pred_check_branch
        %197 = sbr.rel (%p195) target = $region20
      $region19: #{tpu_custom_call.1} parent=5 // pred_region
        // Predicated region
        $region21: #{tpu_custom_call.1} parent=19 // pred_check
          %p198 = pneg %p55
        $region22: #{tpu_custom_call.1} parent=19 // pred_check_branch
          %200 = sbr.rel (%p198) target = $region24
        $region23: #{tpu_custom_call.1} parent=19 // pred_region
          %s201 = sand.u32 %s45, 1
          %s202 = scalar_lea.sflag [#allocation3], %s201
          %s203 = sand.u32 %s45, 1
          %s204 = smul.addr %s203, 8
          %s205 = scalar_lea.vmem [#allocation2], %s204
          %s207 = ssub.s32 128, 128
          %208 = vsyncadd %s202, %s207
          %s209 = sadd.s32 %s29, %s28
          %s210 = smul.addr %s209, 128
          %s211 = scalar_lea.hbm %s0, %s210
          %s213 = sshll.u32 %s205, 4
          %s214 = int_to_ptr.vmem [resolvable:$true] %s213
          %216 = dma.hbm_to_vmem [thread:$0]  %s211, 128, %s214, %s202
        $region24: #{tpu_custom_call.1} parent=19 // pred_fallthru
          _
      $region20: #{tpu_custom_call.1} parent=5 // pred_fallthru
        _
      %p217 = scmp.le.s32.totalorder 1, %s21
      %p218 = scmp.lt.s32.totalorder %s21, 3
      %p219 = pnand %p217, %p218
      %p220 = pneg %p219
      // Predicated region
      $region25: #{tpu_custom_call.1} parent=5 // pred_check
        _
      $region26: #{tpu_custom_call.1} parent=5 // pred_check_branch
        %222 = sbr.rel (%p219) target = $region28
      $region27: #{tpu_custom_call.1} parent=5 // pred_region
        %s223 = ssub.s32 %s21, 1
        %s224 = sand.u32 %s48, 1
        %s225 = scalar_lea.sflag [#allocation3], %s224
        %s226 = sand.u32 %s48, 1
        %s227 = smul.addr %s226, 8
        %s228 = scalar_lea.vmem [#allocation2], %s227
        // Predicated region
        $region29: #{tpu_custom_call.1} parent=27 // pred_check
          %p229 = pneg %p61
        $region30: #{tpu_custom_call.1} parent=27 // pred_check_branch
          %231 = sbr.rel (%p229) target = $region32
        $region31: #{tpu_custom_call.1} parent=27 // pred_region
          %232 = dma.done %s225, 128
        $region32: #{tpu_custom_call.1} parent=27 // pred_fallthru
          _
        // Predicated region
        $region33: #{tpu_custom_call.1} parent=27 // pred_check
          %p233 = pneg %p82
        $region34: #{tpu_custom_call.1} parent=27 // pred_check_branch
          %235 = sbr.rel (%p233) target = $region36
        $region35: #{tpu_custom_call.1} parent=27 // pred_region
          %236 = dma.done [#allocation6], 512
        $region36: #{tpu_custom_call.1} parent=27 // pred_fallthru
          _
        %s237 = sand.u32 %s48, 1
        %s238 = scalar_lea.sflag [#allocation3], %s237
        %s239 = sand.u32 %s48, 1
        %s240 = smul.addr %s239, 8
        %s241 = scalar_lea.vmem [#allocation2], %s240
        %p242 = pneg %p61
        %p243 = pneg %p58
        %p244 = pneg %p82
        %p245 = pneg %p79
        %p246 = pneg %p110
        %p247 = pneg %p107
        %s248 = sand.u32 %s97, 1
        %s249 = scalar_lea.sflag [#allocation4], %s248
        %s250 = sand.u32 %s97, 1
        %s251 = smul.addr %s250, 32
        %s252 = scalar_lea.vmem [#allocation7], %s251
        %p253 = pneg %p138
        %p254 = pneg %p135
        %s255 = sand.u32 %s26, 1
        %s256 = scalar_lea.sflag [#allocation9], %s255
        %s257 = sand.u32 %s125, 1
        %s258 = smul.addr %s257, 32
        %s259 = scalar_lea.vmem [#allocation8], %s258
        %p260 = pneg %p166
        %p261 = pneg %p163
        %s262 = sand.u32 %s26, 1
        %s263 = scalar_lea.sflag [#allocation9], %s262
        %s264 = sand.u32 %s153, 1
        %s265 = smul.addr %s264, 32
        %s266 = scalar_lea.vmem [#allocation10], %s265
        %v267 = vld [vmem:[%s228] sm:$0xff]
        %v268 = vld [vmem:[#allocation5] sm:$0xff]
        %v269 = vld [vmem:[#allocation5 + $0x8] sm:$0xff]
        %v270 = vld [vmem:[#allocation5 + $0x10] sm:$0xff]
        %v271 = vld [vmem:[#allocation5 + $0x18] sm:$0xff]
        %vm272 = vcmask 261120
        %v274 = vsel %vm272, %v267, 0
        %276 = vmatprep.subr.mxu0 0.0
        %277 = vmatpush1.msra.mxu0 %v268
        %278 = vmatprep.subr.mxu0 0.0
        %279 = vmatpush1.msra.mxu0 %v269
        %280 = vmatprep.subr.mxu0 0.0
        %281 = vmatpush1.msra.mxu0 %v270
        %282 = vmatprep.subr.mxu0 0.0
        %283 = vmatpush1.msra.mxu0 %v271
        %284 = vmatprep.subr.mxu0 0.0
        %285 = vmatpush1.msra.mxu0 0.0
        %286 = vmatprep.subr.mxu0 0.0
        %287 = vmatpush1.msra.mxu0 0.0
        %288 = vmatprep.subr.mxu0 0.0
        %289 = vmatpush1.msra.mxu0 0.0
        %290 = vmatprep.subr.mxu0 0.0
        %291 = vmatpush1.msra.mxu0 0.0
        %292 = vmatprep.subr.mxu0 0.0
        %293 = vmatpush1.msra.mxu0 0.0
        %294 = vmatprep.subr.mxu0 0.0
        %295 = vmatpush1.msra.mxu0 0.0
        %296 = vmatprep.subr.mxu0 0.0
        %297 = vmatpush1.msra.mxu0 0.0
        %298 = vmatprep.subr.mxu0 0.0
        %299 = vmatpush1.msra.mxu0 0.0
        %300 = vmatprep.subr.mxu0 0.0
        %301 = vmatpush1.msra.mxu0 0.0
        %302 = vmatprep.subr.mxu0 0.0
        %303 = vmatpush1.msra.mxu0 0.0
        %304 = vmatprep.subr.mxu0 0.0
        %305 = vmatpush1.msra.mxu0 0.0
        %306 = vmatprep.subr.mxu0 0.0
        %307 = vmatpush1.msra.mxu0 0.0
        %308 = vmatprep.subr.mxu0 0.0
        %309 = vmatpush1.msra.mxu0 0.0
        %310 = vmatprep.subr.mxu0 0.0
        %311 = vmatpush1.msra.mxu0 0.0
        %312 = vmatprep.subr.mxu0 0.0
        %313 = vmatpush1.msra.mxu0 0.0
        %314 = vmatprep.subr.mxu0 0.0
        %315 = vmatpush1.msra.mxu0 0.0
        %316 = vmatprep.subr.mxu0 0.0
        %317 = vmatpush1.msra.mxu0 0.0
        %318 = vmatprep.subr.mxu0 0.0
        %319 = vmatpush1.msra.mxu0 0.0
        %320 = vmatprep.subr.mxu0 0.0
        %321 = vmatpush1.msra.mxu0 0.0
        %322 = vmatprep.subr.mxu0 0.0
        %323 = vmatpush1.msra.mxu0 0.0
        %324 = vmatprep.subr.mxu0 0.0
        %325 = vmatpush1.msra.mxu0 0.0
        %326 = vmatprep.subr.mxu0 0.0
        %327 = vmatpush1.msra.mxu0 0.0
        %328 = vmatprep.subr.mxu0 0.0
        %329 = vmatpush1.msra.mxu0 0.0
        %330 = vmatprep.subr.mxu0 0.0
        %331 = vmatpush1.msra.mxu0 0.0
        %332 = vmatprep.subr.mxu0 0.0
        %333 = vmatpush1.msra.mxu0 0.0
        %334 = vmatprep.subr.mxu0 0.0
        %335 = vmatpush1.msra.mxu0 0.0
        %336 = vmatprep.subr.mxu0 0.0
        %337 = vmatpush1.msra.mxu0 0.0
        %338 = vmatprep.subr.mxu0 0.0
        %339 = vmatpush1.msra.mxu0 0.0
        %340 = vmatprep.mubr.f32.mxu0 0.0
        %341 = vmatmul.mubr.f32.gmra.mrb[0].mxu0 %v274
        %v342 = vpop.f32.mrb[0].mxu0
        %v343 = vadd.f32 0.0, %v342
        %v344 = vpop.f32.mrb[0].mxu0
        %345 = vdwg.mxu0
        %347 = vrot.lane.b32.xlu0 %v343, 96
        %v348 = vpop.permute.xlu0 %347
        %350 = vxpose.xlu0.b32.start [1/16] %v348, 128
        %351 = vxpose.xlu0.b32.cont [2/16] 0.0, 128
        %352 = vxpose.xlu0.b32.cont [3/16] 0.0, 128
        %353 = vxpose.xlu0.b32.cont [4/16] 0.0, 128
        %354 = vxpose.xlu0.b32.cont [5/16] 0.0, 128
        %355 = vxpose.xlu0.b32.cont [6/16] 0.0, 128
        %356 = vxpose.xlu0.b32.cont [7/16] 0.0, 128
        %357 = vxpose.xlu0.b32.cont [8/16] 0.0, 128
        %358 = vxpose.xlu0.b32.cont [9/16] 0.0, 128
        %359 = vxpose.xlu0.b32.cont [10/16] 0.0, 128
        %360 = vxpose.xlu0.b32.cont [11/16] 0.0, 128
        %361 = vxpose.xlu0.b32.cont [12/16] 0.0, 128
        %362 = vxpose.xlu0.b32.cont [13/16] 0.0, 128
        %363 = vxpose.xlu0.b32.cont [14/16] 0.0, 128
        %364 = vxpose.xlu0.b32.cont [15/16] 0.0, 128
        %365 = vxpose.xlu0.b32.end [16/16] 0.0, 128
        %v366 = vpop.trf.xlu0
        %v367 = vpop.trf.xlu0
        %v368 = vpop.trf.xlu0
        %v369 = vpop.trf.xlu0
        %v370 = vpop.trf.xlu0
        %v371 = vpop.trf.xlu0
        %v372 = vpop.trf.xlu0
        %v373 = vpop.trf.xlu0
        %v374 = vpop.trf.xlu0
        %v375 = vpop.trf.xlu0
        %v376 = vpop.trf.xlu0
        %v377 = vpop.trf.xlu0
        %v378 = vpop.trf.xlu0
        %v379 = vpop.trf.xlu0
        %v380 = vpop.trf.xlu0
        %v381 = vpop.trf.xlu0
        %vm382 = vcmask 64512
        %383 = vst.msk [vmem:[%s252] sm:$0xff] %vm382, %v343
        %384 = vst.msk [vmem:[%s259] sm:$0xff] %vm382, %v366
        %385 = vrot.lane.b32.xlu0 %v343, 64
        %v386 = vpop.permute.xlu0 %385
        %388 = vst.msk [vmem:[%s266] sm:$0xff] %vm382, %v386
        %389 = vrot.lane.b32.xlu0 %v343, 120
        %v390 = vpop.permute.xlu0 %389
        %s392 = scalar_lea.vmem %s252, 8 [#allocation7]
        %393 = vst.msk [vmem:[%s392] sm:$0xff] %vm382, %v390
        %s394 = scalar_lea.vmem %s259, 8 [#allocation8]
        %395 = vst.msk [vmem:[%s394] sm:$0xff] %vm382, %v367
        %396 = vrot.lane.b32.xlu0 %v343, 56
        %v397 = vpop.permute.xlu0 %396
        %s399 = scalar_lea.vmem %s266, 8 [#allocation10]
        %400 = vst.msk [vmem:[%s399] sm:$0xff] %vm382, %v397
        %401 = vrot.lane.b32.xlu0 %v343, 112
        %v402 = vpop.permute.xlu0 %401
        %s404 = scalar_lea.vmem %s252, 16 [#allocation7]
        %405 = vst.msk [vmem:[%s404] sm:$0xff] %vm382, %v402
        %s406 = scalar_lea.vmem %s259, 16 [#allocation8]
        %407 = vst.msk [vmem:[%s406] sm:$0xff] %vm382, %v368
        %408 = vrot.lane.b32.xlu0 %v343, 48
        %v409 = vpop.permute.xlu0 %408
        %s411 = scalar_lea.vmem %s266, 16 [#allocation10]
        %412 = vst.msk [vmem:[%s411] sm:$0xff] %vm382, %v409
        %413 = vrot.lane.b32.xlu0 %v343, 104
        %v414 = vpop.permute.xlu0 %413
        %s416 = scalar_lea.vmem %s252, 24 [#allocation7]
        %417 = vst.msk [vmem:[%s416] sm:$0xff] %vm382, %v414
        %s418 = scalar_lea.vmem %s259, 24 [#allocation8]
        %419 = vst.msk [vmem:[%s418] sm:$0xff] %vm382, %v369
        %420 = vrot.lane.b32.xlu0 %v343, 40
        %v421 = vpop.permute.xlu0 %420
        %s423 = scalar_lea.vmem %s266, 24 [#allocation10]
        %424 = vst.msk [vmem:[%s423] sm:$0xff] %vm382, %v421
        %s425 = sand.u32 %s97, 1
        %s426 = scalar_lea.sflag [#allocation4], %s425
        %s427 = sand.u32 %s97, 1
        %s428 = smul.addr %s427, 32
        %s429 = scalar_lea.vmem [#allocation7], %s428
        %s430 = sand.u32 %s26, 1
        %s431 = scalar_lea.sflag [#allocation9], %s430
        %s432 = sand.u32 %s125, 1
        %s433 = smul.addr %s432, 32
        %s434 = scalar_lea.vmem [#allocation8], %s433
        %s435 = sand.u32 %s26, 1
        %s436 = scalar_lea.sflag [#allocation9], %s435
        %s437 = sand.u32 %s153, 1
        %s438 = smul.addr %s437, 32
        %s439 = scalar_lea.vmem [#allocation10], %s438
        // Predicated region
        $region37: #{tpu_custom_call.1} parent=27 // pred_check
          %p440 = pneg %p107
        $region38: #{tpu_custom_call.1} parent=27 // pred_check_branch
          %442 = sbr.rel (%p440) target = $region40
        $region39: #{tpu_custom_call.1} parent=27 // pred_region
          %s444 = ssub.s32 512, 512
          %445 = vsyncadd %s426, %s444
          %s446 = smul.addr %s30, 4
          %s447 = sadd.s32 %s31, %s446
          %s448 = smul.addr %s447, 128
          %s449 = scalar_lea.hbm %s2, %s448
          %s450 = sshll.u32 %s429, 4
          %s451 = int_to_ptr.vmem [resolvable:$true] %s450
          %456 = dma.vmem_to_hbm [thread:$0]  %s451, 512, %s449, %s426, 128, 128, 8
        $region40: #{tpu_custom_call.1} parent=27 // pred_fallthru
          _
        // Predicated region
        $region41: #{tpu_custom_call.1} parent=27 // pred_check
          %p457 = pneg %p135
        $region42: #{tpu_custom_call.1} parent=27 // pred_check_branch
          %459 = sbr.rel (%p457) target = $region44
        $region43: #{tpu_custom_call.1} parent=27 // pred_region
          %s461 = ssub.s32 512, 512
          %462 = vsyncadd %s431, %s461
          %s463 = smul.addr %s30, 4
          %s464 = sadd.s32 %s31, %s463
          %s465 = smul.addr %s464, 128
          %s466 = scalar_lea.hbm %s3, %s465
          %s467 = sshll.u32 %s434, 4
          %s468 = int_to_ptr.vmem [resolvable:$true] %s467
          %473 = dma.vmem_to_hbm [thread:$0]  %s468, 512, %s466, %s431, 128, 128, 8
        $region44: #{tpu_custom_call.1} parent=27 // pred_fallthru
          _
        // Predicated region
        $region45: #{tpu_custom_call.1} parent=27 // pred_check
          %p474 = pneg %p163
        $region46: #{tpu_custom_call.1} parent=27 // pred_check_branch
          %476 = sbr.rel (%p474) target = $region48
        $region47: #{tpu_custom_call.1} parent=27 // pred_region
          %s478 = ssub.s32 512, 512
          %479 = vsyncadd %s436, %s478
          %s480 = smul.addr %s30, 4
          %s481 = sadd.s32 %s31, %s480
          %s482 = smul.addr %s481, 128
          %s483 = scalar_lea.hbm %s4, %s482
          %s484 = sshll.u32 %s439, 4
          %s485 = int_to_ptr.vmem [resolvable:$true] %s484
          %490 = dma.vmem_to_hbm [thread:$0]  %s485, 512, %s483, %s436, 128, 128, 8
        $region48: #{tpu_custom_call.1} parent=27 // pred_fallthru
          _
      $region28: #{tpu_custom_call.1} parent=5 // pred_fallthru
        _
      %p491 = scmp.le.s32.totalorder 2, %s21
      // Predicated region
      $region49: #{tpu_custom_call.1} parent=5 // pred_check
        %p492 = pneg %p491
      $region50: #{tpu_custom_call.1} parent=5 // pred_check_branch
        %494 = sbr.rel (%p492) target = $region52
      $region51: #{tpu_custom_call.1} parent=5 // pred_region
        %s495 = ssub.s32 %s21, 2
        // Predicated region
        $region53: #{tpu_custom_call.1} parent=51 // pred_check
          %p496 = pneg %p113
        $region54: #{tpu_custom_call.1} parent=51 // pred_check_branch
          %498 = sbr.rel (%p496) target = $region56
        $region55: #{tpu_custom_call.1} parent=51 // pred_region
          %s499 = sand.u32 %s98, 1
          %s500 = scalar_lea.sflag [#allocation4], %s499
          %s501 = sand.u32 %s98, 1
          %s502 = smul.addr %s501, 32
          %s503 = scalar_lea.vmem [#allocation7], %s502
          %504 = dma.done %s500, 512
        $region56: #{tpu_custom_call.1} parent=51 // pred_fallthru
          _
        // Predicated region
        $region57: #{tpu_custom_call.1} parent=51 // pred_check
          %p505 = pneg %p141
        $region58: #{tpu_custom_call.1} parent=51 // pred_check_branch
          %507 = sbr.rel (%p505) target = $region60
        $region59: #{tpu_custom_call.1} parent=51 // pred_region
          %s508 = sand.u32 %s27, 1
          %s509 = scalar_lea.sflag [#allocation9], %s508
          %s510 = sand.u32 %s126, 1
          %s511 = smul.addr %s510, 32
          %s512 = scalar_lea.vmem [#allocation8], %s511
          %513 = dma.done %s509, 512
        $region60: #{tpu_custom_call.1} parent=51 // pred_fallthru
          _
        // Predicated region
        $region61: #{tpu_custom_call.1} parent=51 // pred_check
          %p514 = pneg %p169
        $region62: #{tpu_custom_call.1} parent=51 // pred_check_branch
          %516 = sbr.rel (%p514) target = $region64
        $region63: #{tpu_custom_call.1} parent=51 // pred_region
          %s517 = sand.u32 %s27, 1
          %s518 = scalar_lea.sflag [#allocation9], %s517
          %s519 = sand.u32 %s154, 1
          %s520 = smul.addr %s519, 32
          %s521 = scalar_lea.vmem [#allocation10], %s520
          %522 = dma.done %s518, 512
        $region64: #{tpu_custom_call.1} parent=51 // pred_fallthru
          _
      $region52: #{tpu_custom_call.1} parent=5 // pred_fallthru
        _
    $region6: #{tpu_custom_call.1} parent=1 // loop_footer
      %s25 = sadd.s32 1, %s21
    $region7: #{tpu_custom_call.1} parent=1 // loop_footer_branch
      %20 = sbr.rel target = $region3
    $region8: #{tpu_custom_call.1} parent=1 // loop_exit
      _
    %523 = vsyncpa [#allocation3], 1
    %s524 = scalar_lea.sflag [#allocation3], 1
    %525 = vsyncpa %s524, 1
    %526 = vsyncpa [#allocation6], 1
    %527 = vsyncpa [#allocation4], 1
    %s528 = scalar_lea.sflag [#allocation4], 1
    %529 = vsyncpa %s528, 1
    %530 = vsyncpa [#allocation9], 1
    %s531 = scalar_lea.sflag [#allocation9], 1
    %532 = vsyncpa %s531, 1

</llo_original>
